<compile_context>
chip_gen: v6e
topology: v6e:2x2x1
jax: 0.10.0
libtpu: 0.0.40
codegen_flags: <defaults>
</compile_context>

<pallas_src>
import math
from functools import partial

import jax
import jax.numpy as jnp
from jax.experimental import pallas as pl
from jax.experimental.pallas import tpu as pltpu

BATCH_NORM_EPSILON = 1e-05
_TILE_S_HARD_CAP = 2048                     # lanes per spatial tile (multiple of 128)
_DEFAULT_VMEM_BYTES = 64 * 1024 * 1024      # conservative fallback (v7x per-TC VMEM)


def _round_up(x, m):
    return (x + m - 1) // m * m


def _vmem_budget():
    """Trace-time VMEM budget (bytes) derived from the actual chip, with fallback."""
    try:
        cap = int(pltpu.get_tpu_info().vmem_capacity_bytes)
    except Exception:
        cap = _DEFAULT_VMEM_BYTES
    return min(int(cap * 0.7), 100 * 1024 * 1024)


def _pick_tile_s(s_pad, cap):
    """Largest multiple of 128 that divides s_pad and is <= cap (always >= 128)."""
    q = s_pad // 128
    best = 128
    for div in range(1, q + 1):
        if q % div == 0 and div * 128 <= cap:
            best = div * 128
    return best


# ---------------------------------------------------------------------------
# Phase 1: conv as MXU matmul + per-tile centered partial stats for batch norm
# ---------------------------------------------------------------------------
def _conv_stats_kernel(w_ref, x_ref, conv_ref, stats_ref, *, s_total, tile_s):
    # w_ref:     [OC, Kd]          conv weight, Kd = K*K*C, resident in VMEM
    # x_ref:     [1, Kd, TILE_S]   im2col patches for this (batch, spatial tile)
    # conv_ref:  [1, OC, TILE_S]   conv output tile (lane-dense, TILE_S % 128 == 0)
    # stats_ref: [1, 1, OC, 2]     per-tile (sum, centered-M2) per channel
    ti = pl.program_id(1)
    conv = jnp.dot(w_ref[...], x_ref[0], preferred_element_type=jnp.float32)   # MXU
    conv_ref[0] = conv

    # Lane-padded columns (beyond s_total) are exact zeros -> sums stay exact;
    # centered M2 is masked to valid columns only.
    valid_i = jnp.minimum(s_total - ti * tile_s, tile_s)
    valid_f = valid_i.astype(jnp.float32)
    csum = jnp.sum(conv, axis=1, keepdims=True)                 # [OC, 1]
    mu = csum / valid_f
    lane = jax.lax.broadcasted_iota(jnp.int32, conv.shape, 1)
    delta = jnp.where(lane < valid_i, conv - mu, 0.0)
    m2 = jnp.sum(delta * delta, axis=1, keepdims=True)          # [OC, 1]
    stats_ref[...] = jnp.concatenate([csum, m2], axis=1)[None, None]


# ---------------------------------------------------------------------------
# Phase 2: folded batch-norm affine (one FMA per element):  y = conv*scale + shift
# ---------------------------------------------------------------------------
def _bn_apply_kernel(scale_ref, shift_ref, conv_ref, o_ref):
    # scale_ref/shift_ref: [OC, 1]   folded per-channel scale / shift (VMEM resident)
    # conv_ref:            [1, OC, TILE_S]
    # o_ref:               [1, OC, TILE_S]   (may alias conv_ref's buffer)
    o_ref[0] = conv_ref[0] * scale_ref[...] + shift_ref[...]


def _im2col_khkwc(x, k, st, p, d):
    """x: [N,C,H,W] -> patches [N, K*K*C, OH*OW] with reduction order (kh, kw, c).

    Built with a single concatenate (no 5-D stack+transpose pass); the trailing
    [OH, OW] -> [OH*OW] merge is a free metadata reshape.
    """
    n, c, h, w = x.shape
    oh = (h + 2 * p - d * (k - 1) - 1) // st + 1
    ow = (w + 2 * p - d * (k - 1) - 1) // st + 1
    xp = jnp.pad(x, ((0, 0), (0, 0), (p, p), (p, p)))
    cols = []
    for kh in range(k):
        for kw in range(k):
            cols.append(xp[:, :, kh * d: kh * d + (oh - 1) * st + 1: st,
                                 kw * d: kw * d + (ow - 1) * st + 1: st])   # [N,C,OH,OW]
    patches = jnp.concatenate(cols, axis=1)            # [N, K*K*C, OH, OW], (kh,kw,c)
    return patches.reshape(n, k * k * c, oh * ow), oh, ow


@partial(jax.jit, static_argnames=("kernel_size", "stride", "padding", "dilation"))
def conv_batch_norm_block(x, weight, gamma, beta, *, kernel_size, stride, padding,
                          dilation):
    """x: [N,C,H,W] NCHW, weight: [OC,C,K,K], gamma/beta: [OC] -> [N,OC,OH,OW]."""
    n, c, _, _ = x.shape
    oc = weight.shape[0]
    k = kernel_size
    kd = c * k * k

    patches, oh, ow = _im2col_khkwc(x, k, stride, padding, dilation)
    s = oh * ow
    s_pad = _round_up(s, 128)
    if s_pad != s:
        # Zero-padded columns produce exact-zero conv outputs -> stats stay exact.
        patches = jnp.pad(patches, ((0, 0), (0, 0), (0, s_pad - s)))

    # ---- tile selection from a generation-aware VMEM budget -------------------
    budget = _vmem_budget()
    weight_bytes = 4 * oc * kd                       # single-buffered (VMEM resident)
    per_col = 8 * (kd + oc)                          # double-buffered x + conv, f32
    avail = max(budget - weight_bytes - (1 << 20), 128 * per_col)
    cap = max(128, min(_TILE_S_HARD_CAP, (avail // per_col) // 128 * 128))
    tile_s = _pick_tile_s(s_pad, cap)
    num_st = s_pad // tile_s
    if n * num_st < 2 and s_pad >= 256:              # keep both v7x TensorCores busy
        tile_s = _pick_tile_s(s_pad, tile_s // 2)
        num_st = s_pad // tile_s

    # Weight flattened in the same (kh, kw, c) reduction order as the patches.
    w_mat = weight.transpose(0, 2, 3, 1).reshape(oc, kd).astype(jnp.float32)

    flops1 = 2 * n * s_pad * kd * oc + 5 * n * oc * s_pad
    bytes1 = 4 * (patches.size + w_mat.size + n * oc * s_pad + n * num_st * oc * 2)

    conv_out, stats = pl.pallas_call(
        partial(_conv_stats_kernel, s_total=s, tile_s=tile_s),
        out_shape=(jax.ShapeDtypeStruct((n, oc, s_pad), jnp.float32),
                   jax.ShapeDtypeStruct((n, num_st, oc, 2), jnp.float32)),
        grid=(n, num_st),
        in_specs=[
            pl.BlockSpec(memory_space=pltpu.MemorySpace.VMEM),           # weight
            pl.BlockSpec((1, kd, tile_s), lambda bi, ti: (bi, 0, ti)),   # patches
        ],
        out_specs=(
            pl.BlockSpec((1, oc, tile_s), lambda bi, ti: (bi, 0, ti)),
            pl.BlockSpec((1, 1, oc, 2), lambda bi, ti: (bi, ti, 0, 0)),
        ),
        compiler_params=pltpu.CompilerParams(
            dimension_semantics=("parallel", "parallel"),
            vmem_limit_bytes=budget),
        cost_estimate=pl.CostEstimate(flops=flops1, transcendentals=0,
                                      bytes_accessed=bytes1),
    )(w_mat, patches)

    # ---- finalize train-mode (biased) batch stats: exact Chan combination -----
    counts = jnp.asarray([min(tile_s, s - i * tile_s) for i in range(num_st)],
                         dtype=jnp.float32)                       # [num_st], static
    sums = stats[..., 0]                                          # [n, num_st, oc]
    m2s = stats[..., 1]
    total = float(n * s)
    mean = jnp.sum(sums, axis=(0, 1)) / total                     # [oc]
    mu_t = sums / counts[None, :, None]
    m2_tot = jnp.sum(m2s, axis=(0, 1)) + jnp.sum(
        counts[None, :, None] * (mu_t - mean[None, None, :]) ** 2, axis=(0, 1))
    var = m2_tot / total                                          # biased, train mode
    scale = gamma * jax.lax.rsqrt(var + BATCH_NORM_EPSILON)
    shift = beta - mean * scale

    # ---- phase 2: y = conv*scale + shift, in place when possible --------------
    io_alias = {2: 0} if s_pad == s else {}
    bytes2 = 8 * n * oc * s_pad + 8 * oc

    out_flat = pl.pallas_call(
        _bn_apply_kernel,
        out_shape=jax.ShapeDtypeStruct((n, oc, s), jnp.float32),
        grid=(n, num_st),
        in_specs=[
            pl.BlockSpec(memory_space=pltpu.MemorySpace.VMEM),           # scale
            pl.BlockSpec(memory_space=pltpu.MemorySpace.VMEM),           # shift
            pl.BlockSpec((1, oc, tile_s), lambda bi, ti: (bi, 0, ti)),   # conv
        ],
        out_specs=pl.BlockSpec((1, oc, tile_s), lambda bi, ti: (bi, 0, ti)),
        compiler_params=pltpu.CompilerParams(
            dimension_semantics=("parallel", "parallel"),
            vmem_limit_bytes=budget),
        cost_estimate=pl.CostEstimate(flops=2 * n * oc * s_pad, transcendentals=0,
                                      bytes_accessed=bytes2),
        input_output_aliases=io_alias,
    )(scale.reshape(oc, 1).astype(jnp.float32),
      shift.reshape(oc, 1).astype(jnp.float32),
      conv_out)

    # [N, OC, OH*OW] -> [N, OC, OH, OW]: pure reshape, no NCHW transpose.
    return out_flat.reshape(n, oc, oh, ow)


def _reference(x, weight, gamma, beta, *, stride, padding, dilation):
    """Pure-JAX reference: Conv2d(no bias) + train-mode BatchNorm2d + identity."""
    conv = jax.lax.conv_general_dilated(
        x, weight, window_strides=(stride, stride),
        padding=((padding, padding), (padding, padding)),
        rhs_dilation=(dilation, dilation),
        dimension_numbers=("NCHW", "OIHW", "NCHW"))
    mean = jnp.mean(conv, axis=(0, 2, 3), keepdims=True)
    var = jnp.mean((conv - mean) ** 2, axis=(0, 2, 3), keepdims=True)
    y = (conv - mean) * jax.lax.rsqrt(var + BATCH_NORM_EPSILON)
    return y * gamma.reshape(1, -1, 1, 1) + beta.reshape(1, -1, 1, 1)


if __name__ == "__main__":
    def run_case(key, n, cin, cout, hw, k, st, p, d):
        kx, kw, kg, kb = jax.random.split(key, 4)
        x = jax.random.normal(kx, (n, cin, hw, hw), dtype=jnp.float32)
        fan_in = cin * k * k
        fan_out = cout * k * k
        bound = math.sqrt(6.0 / (fan_in + fan_out))       # xavier_uniform_ init
        weight = jax.random.uniform(kw, (cout, cin, k, k), minval=-bound,
                                    maxval=bound, dtype=jnp.float32)
        gamma = 1.0 + 0.1 * jax.random.normal(kg, (cout,), dtype=jnp.float32)
        beta = 0.1 * jax.random.normal(kb, (cout,), dtype=jnp.float32)

        out = conv_batch_norm_block(x, weight, gamma, beta, kernel_size=k,
                                    stride=st, padding=p, dilation=d)
        out = jax.block_until_ready(out)
        ref = _reference(x, weight, gamma, beta, stride=st, padding=p, dilation=d)
        assert out.shape == ref.shape, (out.shape, ref.shape)
        err = float(jnp.max(jnp.abs(out - ref)))
        assert jnp.allclose(out, ref, atol=1e-4, rtol=1e-4), f"mismatch, max|d|={err}"

    key = jax.random.PRNGKey(0)
    k0, k1 = jax.random.split(key)
    # primary case: batch=2, 4->8 channels, 16x16, 3x3 / stride 1 / pad 1 (S=256)
    run_case(k0, 2, 4, 8, 16, 3, 1, 1, 1)
    # lane-padded / masked-stats path: batch=1, 3->5 ch, 15x15, 3x3 / stride 2 (S=49)
    run_case(k1, 1, 3, 5, 15, 3, 2, 0, 1)

    print("KERNEL_OK")
</pallas_src>

<mosaic_0001>
module attributes {stable_mosaic.version = 11 : i64} {
  func.func @_conv_stats_kernel(%arg0: i32, %arg1: i32, %arg2: memref<8x36xf32, #tpu.memory_space<vmem>>, %arg3: memref<1x36x256xf32, #tpu.memory_space<vmem>>, %arg4: memref<1x8x256xf32, #tpu.memory_space<vmem>>, %arg5: memref<1x1x8x2xf32, #tpu.memory_space<vmem>>) attributes {dimension_semantics = [#tpu.dimension_semantics<parallel>, #tpu.dimension_semantics<parallel>], iteration_bounds = array<i64: 2, 1>, scalar_prefetch = 0 : i64, scratch_operands = 0 : i64, tpu.core_type = #tpu.core_type<tc>, window_params = [{pipeline_mode = #tpu.pipeline_mode<synchronous>, transform_indices = @transform_0, window_bounds = array<i64: 8, 36>}, {transform_indices = @transform_1, window_bounds = array<i64: 1, 36, 256>}, {transform_indices = @transform_2, window_bounds = array<i64: 1, 8, 256>}, {transform_indices = @transform_3, window_bounds = array<i64: 1, 1, 8, 2>}]} {
    %c0 = arith.constant 0 : index
    %c0_0 = arith.constant 0 : index
    %0 = vector.load %arg2[%c0, %c0_0] : memref<8x36xf32, #tpu.memory_space<vmem>>, vector<8x36xf32>
    %c0_1 = arith.constant 0 : index
    %c0_2 = arith.constant 0 : index
    %c0_3 = arith.constant 0 : index
    %1 = vector.load %arg3[%c0_1, %c0_2, %c0_3] : memref<1x36x256xf32, #tpu.memory_space<vmem>>, vector<1x36x256xf32>
    %2 = vector.shape_cast %1 : vector<1x36x256xf32> to vector<36x256xf32>
    %cst = arith.constant dense<0.000000e+00> : vector<8x256xf32>
    %3 = tpu.matmul %0, %2, %cst {dimension_numbers = #tpu.dot_dimension_numbers<[1], [0], [0], [1], [0, 0, 1, 1], [], []>} : vector<8x36xf32>, vector<36x256xf32>, vector<8x256xf32> -> vector<8x256xf32>
    %c0_4 = arith.constant 0 : index
    %c0_5 = arith.constant 0 : index
    %c0_6 = arith.constant 0 : index
    %4 = vector.load %arg4[%c0_4, %c0_5, %c0_6] : memref<1x8x256xf32, #tpu.memory_space<vmem>>, vector<1x8x256xf32>
    %5 = vector.shape_cast %4 : vector<1x8x256xf32> to vector<8x256xf32>
    %6 = vector.shape_cast %3 : vector<8x256xf32> to vector<1x8x256xf32>
    tpu.vector_store %arg4[%c0_4, %c0_5, %c0_6], %6 {strides = array<i32>} : memref<1x8x256xf32, #tpu.memory_space<vmem>>, vector<1x8x256xf32>,
    %c256_i32 = arith.constant 256 : i32
    %7 = arith.muli %arg1, %c256_i32 : i32
    %c256_i32_7 = arith.constant 256 : i32
    %8 = arith.subi %c256_i32_7, %7 : i32
    %c256_i32_8 = arith.constant 256 : i32
    %9 = arith.minsi %8, %c256_i32_8 : i32
    %10 = arith.sitofp %9 : i32 to f32
    %cst_9 = arith.constant dense<0.000000e+00> : vector<8xf32>
    %11 = vector.multi_reduction <add>, %3, %cst_9 [1] : vector<8x256xf32> to vector<8xf32>
    %12 = vector.shape_cast %11 : vector<8xf32> to vector<8x1xf32>
    %13 = vector.broadcast %10 : f32 to vector<8x1xf32>
    %14 = arith.divf %12, %13 : vector<8x1xf32>
    %15 = tpu.iota {dimensions = array<i32: 1>} : vector<8x256xi32>
    %16 = vector.broadcast %9 : i32 to vector<8x256xi32>
    %17 = arith.cmpi slt, %15, %16 : vector<8x256xi32>
    %18 = vector.broadcast %14 : vector<8x1xf32> to vector<8x256xf32>
    %19 = arith.subf %3, %18 : vector<8x256xf32>
    %cst_10 = arith.constant 0.000000e+00 : f32
    %20 = vector.broadcast %cst_10 : f32 to vector<8x256xf32>
    %21 = arith.select %17, %19, %20 : vector<8x256xi1>, vector<8x256xf32>
    %22 = arith.mulf %21, %21 : vector<8x256xf32>
    %cst_11 = arith.constant dense<0.000000e+00> : vector<8xf32>
    %23 = vector.multi_reduction <add>, %22, %cst_11 [1] : vector<8x256xf32> to vector<8xf32>
    %24 = vector.shape_cast %23 : vector<8xf32> to vector<8x1xf32>
    %25 = tpu.concatenate %12, %24 in 1 : vector<8x1xf32>, vector<8x1xf32> -> vector<8x2xf32>
    %26 = vector.shape_cast %25 : vector<8x2xf32> to vector<1x1x8x2xf32>
    %c0_12 = arith.constant 0 : index
    %c0_13 = arith.constant 0 : index
    %c0_14 = arith.constant 0 : index
    %c0_15 = arith.constant 0 : index
    %27 = vector.load %arg5[%c0_12, %c0_13, %c0_14, %c0_15] : memref<1x1x8x2xf32, #tpu.memory_space<vmem>>, vector<1x1x8x2xf32>
    tpu.vector_store %arg5[%c0_12, %c0_13, %c0_14, %c0_15], %26 {strides = array<i32>} : memref<1x1x8x2xf32, #tpu.memory_space<vmem>>, vector<1x1x8x2xf32>,
    return
  }
  func.func @transform_0(%arg0: i32, %arg1: i32) -> (i32, i32) {
    %c0_i32 = arith.constant 0 : i32
    %c0_i32_0 = arith.constant 0 : i32
    %c0_i32_1 = arith.constant 0 : i32
    return %c0_i32, %c0_i32_0 : i32, i32
  }
  func.func @transform_1(%arg0: i32, %arg1: i32) -> (i32, i32, i32) {
    %c0_i32 = arith.constant 0 : i32
    %c0_i32_0 = arith.constant 0 : i32
    return %arg0, %c0_i32, %arg1 : i32, i32, i32
  }
  func.func @transform_2(%arg0: i32, %arg1: i32) -> (i32, i32, i32) {
    %c0_i32 = arith.constant 0 : i32
    %c0_i32_0 = arith.constant 0 : i32
    return %arg0, %c0_i32, %arg1 : i32, i32, i32
  }
  func.func @transform_3(%arg0: i32, %arg1: i32) -> (i32, i32, i32, i32) {
    %c0_i32 = arith.constant 0 : i32
    %c0_i32_0 = arith.constant 0 : i32
    %c0_i32_1 = arith.constant 0 : i32
    return %arg0, %arg1, %c0_i32, %c0_i32_0 : i32, i32, i32, i32
  }
}

module attributes {stable_mosaic.version = 11 : i64} {
  func.func @_bn_apply_kernel(%arg0: i32, %arg1: i32, %arg2: memref<8x1xf32, #tpu.memory_space<vmem>>, %arg3: memref<8x1xf32, #tpu.memory_space<vmem>>, %arg4: memref<1x8x256xf32, #tpu.memory_space<vmem>>, %arg5: memref<1x8x256xf32, #tpu.memory_space<vmem>>) attributes {dimension_semantics = [#tpu.dimension_semantics<parallel>, #tpu.dimension_semantics<parallel>], iteration_bounds = array<i64: 2, 1>, scalar_prefetch = 0 : i64, scratch_operands = 0 : i64, tpu.core_type = #tpu.core_type<tc>, window_params = [{pipeline_mode = #tpu.pipeline_mode<synchronous>, transform_indices = @transform_0, window_bounds = array<i64: 8, 1>}, {pipeline_mode = #tpu.pipeline_mode<synchronous>, transform_indices = @transform_1, window_bounds = array<i64: 8, 1>}, {transform_indices = @transform_2, window_bounds = array<i64: 1, 8, 256>}, {transform_indices = @transform_3, window_bounds = array<i64: 1, 8, 256>}]} {
    %c0 = arith.constant 0 : index
    %c0_0 = arith.constant 0 : index
    %c0_1 = arith.constant 0 : index
    %0 = vector.load %arg4[%c0, %c0_0, %c0_1] : memref<1x8x256xf32, #tpu.memory_space<vmem>>, vector<1x8x256xf32>
    %1 = vector.shape_cast %0 : vector<1x8x256xf32> to vector<8x256xf32>
    %c0_2 = arith.constant 0 : index
    %c0_3 = arith.constant 0 : index
    %2 = vector.load %arg2[%c0_2, %c0_3] : memref<8x1xf32, #tpu.memory_space<vmem>>, vector<8x1xf32>
    %3 = vector.broadcast %2 : vector<8x1xf32> to vector<8x256xf32>
    %4 = arith.mulf %1, %3 : vector<8x256xf32>
    %c0_4 = arith.constant 0 : index
    %c0_5 = arith.constant 0 : index
    %5 = vector.load %arg3[%c0_4, %c0_5] : memref<8x1xf32, #tpu.memory_space<vmem>>, vector<8x1xf32>
    %6 = vector.broadcast %5 : vector<8x1xf32> to vector<8x256xf32>
    %7 = arith.addf %4, %6 : vector<8x256xf32>
    %c0_6 = arith.constant 0 : index
    %c0_7 = arith.constant 0 : index
    %c0_8 = arith.constant 0 : index
    %8 = vector.load %arg5[%c0_6, %c0_7, %c0_8] : memref<1x8x256xf32, #tpu.memory_space<vmem>>, vector<1x8x256xf32>
    %9 = vector.shape_cast %8 : vector<1x8x256xf32> to vector<8x256xf32>
    %10 = vector.shape_cast %7 : vector<8x256xf32> to vector<1x8x256xf32>
    tpu.vector_store %arg5[%c0_6, %c0_7, %c0_8], %10 {strides = array<i32>} : memref<1x8x256xf32, #tpu.memory_space<vmem>>, vector<1x8x256xf32>,
    return
  }
  func.func @transform_0(%arg0: i32, %arg1: i32) -> (i32, i32) {
    %c0_i32 = arith.constant 0 : i32
    %c0_i32_0 = arith.constant 0 : i32
    %c0_i32_1 = arith.constant 0 : i32
    return %c0_i32, %c0_i32_0 : i32, i32
  }
  func.func @transform_1(%arg0: i32, %arg1: i32) -> (i32, i32) {
    %c0_i32 = arith.constant 0 : i32
    %c0_i32_0 = arith.constant 0 : i32
    %c0_i32_1 = arith.constant 0 : i32
    return %c0_i32, %c0_i32_0 : i32, i32
  }
  func.func @transform_2(%arg0: i32, %arg1: i32) -> (i32, i32, i32) {
    %c0_i32 = arith.constant 0 : i32
    %c0_i32_0 = arith.constant 0 : i32
    return %arg0, %c0_i32, %arg1 : i32, i32, i32
  }
  func.func @transform_3(%arg0: i32, %arg1: i32) -> (i32, i32, i32) {
    %c0_i32 = arith.constant 0 : i32
    %c0_i32_0 = arith.constant 0 : i32
    return %arg0, %c0_i32, %arg1 : i32, i32, i32
  }
}

</mosaic_0001>

<llo_original>
// kernel: conv_batch_norm_block.3
$region0: #{conv_batch_norm_block.3}
  #allocation0 [shape = 'u32[]', space=smem, size = 0x4, offset = 0x4, fixed_abs, tag = 'smem constant byte address 0x4 - core index']
  #allocation1 [shape = 'u32[144,128]{1,0:T(1,128)}', space=vmem, size = 0x12000, scoped, tag = 'internal scratch']
  %s0 = inlined_call_operand.vmem [shape: f32[8,1], index: 0, kind: input, shape index: {}]
  %s1 = inlined_call_operand.vmem [shape: f32[8,1], index: 1, kind: input, shape index: {}]
  %s2 = inlined_call_operand.vmem [shape: f32[2,8,256], index: 2, kind: input, shape index: {}, may-alias: {2,3}]
  %s3 = inlined_call_operand.vmem [shape: f32[2,8,256], index: 3, kind: output, shape index: {}, may-alias: {2,3}]
  %s4 = sld [smem:[#allocation0]]
  $region45: #{conv_batch_norm_block.3} parent=0
    _
  %s6 = ssub.s32 1, %s4
  %s7 = scalar_select 0, %s6, %s4
  loop: start=0, step=1, limit=4
  $region2: #{conv_batch_norm_block.3} parent=0 // loop_pre_header
    _
  $region3: #{conv_batch_norm_block.3} parent=0 // loop_header
    %s9 = sphi 0, %s13
    %p10 = scmp.ge.s32.totalorder %s9, 4
    %s16 = sphi 0, %s28
    %s17 = sphi 0, %s24
    %s18 = sphi 0, %s16
    %s19 = sphi 0, %s17
    %s20 = sphi 0, %s18
    %s21 = sphi 0, %s19
    %s29 = sphi 0, %s29
    %s31 = sphi 0, %s29
    %s32 = sphi 0, %s31
    %s46 = sphi 0, %s32
    %s50 = sphi 0, %s50
    %s52 = sphi 0, %s50
    %s53 = sphi 0, %s52
    %s67 = sphi 0, %s53
    %s75 = sphi 0, %s77
    %s78 = sphi 0, %s75
    %s79 = sphi 0, %s78
    %s95 = sphi 0, %s79
    %s103 = sphi 0, %s105
    %s106 = sphi 0, %s103
    %s107 = sphi 0, %s106
    %s123 = sphi 0, %s107
  $region4: #{conv_batch_norm_block.3} parent=0 // loop_header_branch
    %12 = sbr.rel (%p10) target = $region8
  $region5: #{conv_batch_norm_block.3} parent=0 // loop_body
    %s14 = ssub.s32 %s9, 1
    %s15 = ssub.s32 %s9, 2
    %s22 = sadd.s32 1, %s17
    %p23 = scmp.ge.s32.totalorder %s22, 1
    %s24 = scalar_select %p23, 0, %s22
    %s25 = sadd.s32 1, %s16
    %s26 = scalar_select %p23, %s25, %s16
    %p27 = scmp.ge.s32.totalorder %s26, 2
    %s28 = scalar_select %p27, 0, %s26
    %s30 = sadd.s32 %s29, 1
    %p33 = scmp.eq.s32.totalorder %s9, 1
    %p34 = scmp.ne.s32.totalorder %s29, %s31
    %p35 = scmp.eq.s32.totalorder %s9, 0
    %p36 = por %p34, %p35
    %p37 = scmp.ne.s32.totalorder %s29, %s31
    %p38 = scmp.eq.s32.totalorder %s14, 1
    %p39 = por %p37, %p38
    %p40 = scmp.ne.s32.totalorder %s31, %s32
    %p41 = scmp.eq.s32.totalorder %s14, 0
    %p42 = por %p40, %p41
    %p43 = scmp.ne.s32.totalorder %s31, %s32
    %p44 = scmp.eq.s32.totalorder %s15, 1
    %p45 = por %p43, %p44
    %p47 = scmp.ne.s32.totalorder %s32, %s46
    %p48 = scmp.eq.s32.totalorder %s15, 0
    %p49 = por %p47, %p48
    %s51 = sadd.s32 %s50, 1
    %p54 = scmp.eq.s32.totalorder %s9, 1
    %p55 = scmp.ne.s32.totalorder %s50, %s52
    %p56 = scmp.eq.s32.totalorder %s9, 0
    %p57 = por %p55, %p56
    %p58 = scmp.ne.s32.totalorder %s50, %s52
    %p59 = scmp.eq.s32.totalorder %s14, 1
    %p60 = por %p58, %p59
    %p61 = scmp.ne.s32.totalorder %s52, %s53
    %p62 = scmp.eq.s32.totalorder %s14, 0
    %p63 = por %p61, %p62
    %p64 = scmp.ne.s32.totalorder %s52, %s53
    %p65 = scmp.eq.s32.totalorder %s15, 1
    %p66 = por %p64, %p65
    %p68 = scmp.ne.s32.totalorder %s53, %s67
    %p69 = scmp.eq.s32.totalorder %s15, 0
    %p70 = por %p68, %p69
    %s71 = ssub.s32 %s16, %s28
    %s72 = ssub.s32 %s17, %s24
    %s73 = sor.u32 %s71, %s72
    %p74 = scmp.eq.s32.totalorder %s73, 0
    %s76 = sadd.s32 %s75, 1
    %s77 = scalar_select %p74, %s75, %s76
    %p80 = pneg %p74
    %p81 = scmp.eq.s32.totalorder %s9, 1
    %p82 = por %p80, %p81
    %p83 = scmp.ne.s32.totalorder %s75, %s78
    %p84 = scmp.eq.s32.totalorder %s9, 0
    %p85 = por %p83, %p84
    %p86 = scmp.ne.s32.totalorder %s75, %s78
    %p87 = scmp.eq.s32.totalorder %s14, 1
    %p88 = por %p86, %p87
    %p89 = scmp.ne.s32.totalorder %s78, %s79
    %p90 = scmp.eq.s32.totalorder %s14, 0
    %p91 = por %p89, %p90
    %p92 = scmp.ne.s32.totalorder %s78, %s79
    %p93 = scmp.eq.s32.totalorder %s15, 1
    %p94 = por %p92, %p93
    %p96 = scmp.ne.s32.totalorder %s79, %s95
    %p97 = scmp.eq.s32.totalorder %s15, 0
    %p98 = por %p96, %p97
    %s99 = ssub.s32 %s16, %s28
    %s100 = ssub.s32 %s17, %s24
    %s101 = sor.u32 %s99, %s100
    %p102 = scmp.eq.s32.totalorder %s101, 0
    %s104 = sadd.s32 %s103, 1
    %s105 = scalar_select %p102, %s103, %s104
    %p108 = pneg %p102
    %p109 = scmp.eq.s32.totalorder %s9, 1
    %p110 = por %p108, %p109
    %p111 = scmp.ne.s32.totalorder %s103, %s106
    %p112 = scmp.eq.s32.totalorder %s9, 0
    %p113 = por %p111, %p112
    %p114 = scmp.ne.s32.totalorder %s103, %s106
    %p115 = scmp.eq.s32.totalorder %s14, 1
    %p116 = por %p114, %p115
    %p117 = scmp.ne.s32.totalorder %s106, %s107
    %p118 = scmp.eq.s32.totalorder %s14, 0
    %p119 = por %p117, %p118
    %p120 = scmp.ne.s32.totalorder %s106, %s107
    %p121 = scmp.eq.s32.totalorder %s15, 1
    %p122 = por %p120, %p121
    %p124 = scmp.ne.s32.totalorder %s107, %s123
    %p125 = scmp.eq.s32.totalorder %s15, 0
    %p126 = por %p124, %p125
    %p127 = scmp.le.s32.totalorder 1, %s9
    %p128 = scmp.lt.s32.totalorder %s9, 3
    %p129 = pnand %p127, %p128
    %p130 = pneg %p129
    // Predicated region
    $region9: #{conv_batch_norm_block.3} parent=5 // pred_check
      _
    $region10: #{conv_batch_norm_block.3} parent=5 // pred_check_branch
      %132 = sbr.rel (%p129) target = $region12
    $region11: #{conv_batch_norm_block.3} parent=5 // pred_region
      %s133 = ssub.s32 %s9, 1
      // Predicated region
      $region13: #{conv_batch_norm_block.3} parent=11 // pred_check
        %p134 = pneg %p42
      $region14: #{conv_batch_norm_block.3} parent=11 // pred_check_branch
        %136 = sbr.rel (%p134) target = $region16
      $region15: #{conv_batch_norm_block.3} parent=11 // pred_region
        _
      $region16: #{conv_batch_norm_block.3} parent=11 // pred_fallthru
        _
      // Predicated region
      $region17: #{conv_batch_norm_block.3} parent=11 // pred_check
        %p137 = pneg %p63
      $region18: #{conv_batch_norm_block.3} parent=11 // pred_check_branch
        %139 = sbr.rel (%p137) target = $region20
      $region19: #{conv_batch_norm_block.3} parent=11 // pred_region
        _
      $region20: #{conv_batch_norm_block.3} parent=11 // pred_fallthru
        _
    $region12: #{conv_batch_norm_block.3} parent=5 // pred_fallthru
      _
    %p140 = scmp.lt.s32.totalorder %s9, 2
    // Predicated region
    $region21: #{conv_batch_norm_block.3} parent=5 // pred_check
      %p141 = pneg %p140
    $region22: #{conv_batch_norm_block.3} parent=5 // pred_check_branch
      %143 = sbr.rel (%p141) target = $region24
    $region23: #{conv_batch_norm_block.3} parent=5 // pred_region
      // Predicated region
      $region25: #{conv_batch_norm_block.3} parent=23 // pred_check
        %p144 = pneg %p85
      $region26: #{conv_batch_norm_block.3} parent=23 // pred_check_branch
        %146 = sbr.rel (%p144) target = $region28
      $region27: #{conv_batch_norm_block.3} parent=23 // pred_region
        %s147 = smul.u32 2, %s17
        %p148 = scmp.lt.s32.totalorder %s16, 1
        %s149 = scalar_select %p148, %s16, 1
        %p150 = scmp.lt.s32.totalorder %s147, 1
        %s151 = scalar_select %p150, %s147, 1
        %s152 = smul.addr %s149, 2
        %s153 = sadd.s32 %s151, %s152
        %s154 = smul.addr %s153, 8
        %s155 = scalar_lea.vmem %s2, %s154
        %s156 = smul.u32 2, %s17
      $region28: #{conv_batch_norm_block.3} parent=23 // pred_fallthru
        _
    $region24: #{conv_batch_norm_block.3} parent=5 // pred_fallthru
      _
    %p157 = scmp.le.s32.totalorder 1, %s9
    %p158 = scmp.lt.s32.totalorder %s9, 3
    %p159 = pnand %p157, %p158
    %p160 = pneg %p159
    // Predicated region
    $region29: #{conv_batch_norm_block.3} parent=5 // pred_check
      _
    $region30: #{conv_batch_norm_block.3} parent=5 // pred_check_branch
      %162 = sbr.rel (%p159) target = $region32
    $region31: #{conv_batch_norm_block.3} parent=5 // pred_region
      %s163 = ssub.s32 %s9, 1
      %p164 = pneg %p42
      %p165 = pneg %p39
      %p166 = pneg %p63
      %p167 = pneg %p60
      %s168 = smul.u32 2, %s19
      %p169 = scmp.lt.s32.totalorder %s18, 1
      %s170 = scalar_select %p169, %s18, 1
      %p171 = scmp.lt.s32.totalorder %s168, 1
      %s172 = scalar_select %p171, %s168, 1
      %s173 = smul.addr %s170, 2
      %s174 = sadd.s32 %s172, %s173
      %s175 = smul.addr %s174, 8
      %s176 = scalar_lea.vmem %s2, %s175
      %p177 = pneg %p91
      %p178 = pneg %p88
      %p179 = pneg %p119
      %p180 = pneg %p116
      %s181 = smul.u32 2, %s19
      %p182 = scmp.lt.s32.totalorder %s18, 1
      %s183 = scalar_select %p182, %s18, 1
      %p184 = scmp.lt.s32.totalorder %s181, 1
      %s185 = scalar_select %p184, %s181, 1
      %s186 = smul.addr %s183, 2
      %s187 = sadd.s32 %s185, %s186
      %s188 = smul.addr %s187, 8
      %s189 = scalar_lea.vmem %s3, %s188
      %s190 = smul.u32 2, %s19
      %p191 = scmp.lt.s32.totalorder %s18, 1
      %s192 = scalar_select %p191, %s18, 1
      %p193 = scmp.lt.s32.totalorder %s190, 1
      %s194 = scalar_select %p193, %s190, 1
      %s195 = smul.addr %s192, 2
      %s196 = sadd.s32 %s194, %s195
      %s197 = smul.addr %s196, 8
      %s198 = scalar_lea.vmem %s2, %s197
      %s199 = smul.u32 2, %s19
      %s200 = smul.u32 2, %s19
      %p201 = scmp.lt.s32.totalorder %s18, 1
      %s202 = scalar_select %p201, %s18, 1
      %p203 = scmp.lt.s32.totalorder %s200, 1
      %s204 = scalar_select %p203, %s200, 1
      %s205 = smul.addr %s202, 2
      %s206 = sadd.s32 %s204, %s205
      %s207 = smul.addr %s206, 8
      %s208 = scalar_lea.vmem %s3, %s207
      %s209 = smul.u32 2, %s19
      %v210 = vld [vmem:[%s198] sm:$0xff]
      %v211 = vld [vmem:[%s198 + $0x8] sm:$0xff]
      %v212 = vld [vmem:[%s0] sm:$0xff]
      %214 = vset.pattern.permute.xlu0 0
      %215 = vperm.xlu0 %214, %v212
      %v216 = vpop.permute.xlu0 %215
      %v218 = vmul.f32 %v210, %v216
      %v219 = vmul.f32 %v211, %v216
      %v220 = vld [vmem:[%s1] sm:$0xff]
      %222 = vset.pattern.permute.xlu0 0
      %223 = vperm.xlu0 %222, %v220
      %v224 = vpop.permute.xlu0 %223
      %v226 = vadd.f32 %v218, %v224
      %v227 = vadd.f32 %v219, %v224
      %228 = vst [vmem:[%s208] sm:$0xff] %v226
      %229 = vst [vmem:[%s208 + $0x8] sm:$0xff] %v227
      %s230 = smul.u32 2, %s19
      %p231 = scmp.lt.s32.totalorder %s18, 1
      %s232 = scalar_select %p231, %s18, 1
      %p233 = scmp.lt.s32.totalorder %s230, 1
      %s234 = scalar_select %p233, %s230, 1
      %s235 = smul.addr %s232, 2
      %s236 = sadd.s32 %s234, %s235
      %s237 = smul.addr %s236, 8
      %s238 = scalar_lea.vmem %s3, %s237
      // Predicated region
      $region33: #{conv_batch_norm_block.3} parent=31 // pred_check
        %p239 = pneg %p116
      $region34: #{conv_batch_norm_block.3} parent=31 // pred_check_branch
        %241 = sbr.rel (%p239) target = $region36
      $region35: #{conv_batch_norm_block.3} parent=31 // pred_region
        %s242 = smul.u32 2, %s19
      $region36: #{conv_batch_norm_block.3} parent=31 // pred_fallthru
        _
    $region32: #{conv_batch_norm_block.3} parent=5 // pred_fallthru
      _
    %p243 = scmp.le.s32.totalorder 2, %s9
    // Predicated region
    $region37: #{conv_batch_norm_block.3} parent=5 // pred_check
      %p244 = pneg %p243
    $region38: #{conv_batch_norm_block.3} parent=5 // pred_check_branch
      %246 = sbr.rel (%p244) target = $region40
    $region39: #{conv_batch_norm_block.3} parent=5 // pred_region
      %s247 = ssub.s32 %s9, 2
      // Predicated region
      $region41: #{conv_batch_norm_block.3} parent=39 // pred_check
        %p248 = pneg %p122
      $region42: #{conv_batch_norm_block.3} parent=39 // pred_check_branch
        %250 = sbr.rel (%p248) target = $region44
      $region43: #{conv_batch_norm_block.3} parent=39 // pred_region
        %s251 = smul.u32 2, %s21
        %p252 = scmp.lt.s32.totalorder %s20, 1
        %s253 = scalar_select %p252, %s20, 1
        %p254 = scmp.lt.s32.totalorder %s251, 1
        %s255 = scalar_select %p254, %s251, 1
        %s256 = smul.addr %s253, 2
        %s257 = sadd.s32 %s255, %s256
        %s258 = smul.addr %s257, 8
        %s259 = scalar_lea.vmem %s3, %s258
      $region44: #{conv_batch_norm_block.3} parent=39 // pred_fallthru
        _
    $region40: #{conv_batch_norm_block.3} parent=5 // pred_fallthru
      _
  $region6: #{conv_batch_norm_block.3} parent=0 // loop_footer
    %s13 = sadd.s32 1, %s9
  $region7: #{conv_batch_norm_block.3} parent=0 // loop_footer_branch
    %8 = sbr.rel target = $region3
  $region8: #{conv_batch_norm_block.3} parent=0 // loop_exit
    _

// kernel: conv_batch_norm_block.2
$region0: #{conv_batch_norm_block.2}
  #allocation0 [shape = 'u32[]', space=smem, size = 0x4, offset = 0x4, fixed_abs, tag = 'smem constant byte address 0x4 - core index']
  #allocation1 [shape = 'u32[144,128]{1,0:T(1,128)}', space=vmem, size = 0x12000, scoped, tag = 'internal scratch']
  %s0 = inlined_call_operand.vmem [shape: f32[8,36], index: 0, kind: input, shape index: {}]
  %s1 = inlined_call_operand.vmem [shape: f32[2,36,256], index: 1, kind: input, shape index: {}]
  %s2 = inlined_call_operand.vmem [shape: f32[2,8,256], index: 2, kind: output, shape index: {0}]
  %s3 = inlined_call_operand.vmem [shape: f32[2,1,8,2], index: 3, kind: output, shape index: {1}]
  %4 = xla_tuple %s2, %s3
  %s5 = sld [smem:[#allocation0]]
  $region49: #{conv_batch_norm_block.2} parent=0
    _
  %s7 = ssub.s32 1, %s5
  %s8 = scalar_select 0, %s7, %s5
  loop: start=0, step=1, limit=4
  $region2: #{conv_batch_norm_block.2} parent=0 // loop_pre_header
    _
  $region3: #{conv_batch_norm_block.2} parent=0 // loop_header
    %s10 = sphi 0, %s14
    %p11 = scmp.ge.s32.totalorder %s10, 4
    %s17 = sphi 0, %s29
    %s18 = sphi 0, %s25
    %s19 = sphi 0, %s17
    %s20 = sphi 0, %s18
    %s21 = sphi 0, %s19
    %s22 = sphi 0, %s20
    %s30 = sphi 0, %s30
    %s32 = sphi 0, %s30
    %s33 = sphi 0, %s32
    %s47 = sphi 0, %s33
    %s55 = sphi 0, %s57
    %s58 = sphi 0, %s55
    %s59 = sphi 0, %s58
    %s75 = sphi 0, %s59
    %s83 = sphi 0, %s85
    %s86 = sphi 0, %s83
    %s87 = sphi 0, %s86
    %s103 = sphi 0, %s87
    %s111 = sphi 0, %s113
    %s114 = sphi 0, %s111
    %s115 = sphi 0, %s114
    %s131 = sphi 0, %s115
  $region4: #{conv_batch_norm_block.2} parent=0 // loop_header_branch
    %13 = sbr.rel (%p11) target = $region8
  $region5: #{conv_batch_norm_block.2} parent=0 // loop_body
    %s15 = ssub.s32 %s10, 1
    %s16 = ssub.s32 %s10, 2
    %s23 = sadd.s32 1, %s18
    %p24 = scmp.ge.s32.totalorder %s23, 1
    %s25 = scalar_select %p24, 0, %s23
    %s26 = sadd.s32 1, %s17
    %s27 = scalar_select %p24, %s26, %s17
    %p28 = scmp.ge.s32.totalorder %s27, 2
    %s29 = scalar_select %p28, 0, %s27
    %s31 = sadd.s32 %s30, 1
    %p34 = scmp.eq.s32.totalorder %s10, 1
    %p35 = scmp.ne.s32.totalorder %s30, %s32
    %p36 = scmp.eq.s32.totalorder %s10, 0
    %p37 = por %p35, %p36
    %p38 = scmp.ne.s32.totalorder %s30, %s32
    %p39 = scmp.eq.s32.totalorder %s15, 1
    %p40 = por %p38, %p39
    %p41 = scmp.ne.s32.totalorder %s32, %s33
    %p42 = scmp.eq.s32.totalorder %s15, 0
    %p43 = por %p41, %p42
    %p44 = scmp.ne.s32.totalorder %s32, %s33
    %p45 = scmp.eq.s32.totalorder %s16, 1
    %p46 = por %p44, %p45
    %p48 = scmp.ne.s32.totalorder %s33, %s47
    %p49 = scmp.eq.s32.totalorder %s16, 0
    %p50 = por %p48, %p49
    %s51 = ssub.s32 %s17, %s29
    %s52 = ssub.s32 %s18, %s25
    %s53 = sor.u32 %s51, %s52
    %p54 = scmp.eq.s32.totalorder %s53, 0
    %s56 = sadd.s32 %s55, 1
    %s57 = scalar_select %p54, %s55, %s56
    %p60 = pneg %p54
    %p61 = scmp.eq.s32.totalorder %s10, 1
    %p62 = por %p60, %p61
    %p63 = scmp.ne.s32.totalorder %s55, %s58
    %p64 = scmp.eq.s32.totalorder %s10, 0
    %p65 = por %p63, %p64
    %p66 = scmp.ne.s32.totalorder %s55, %s58
    %p67 = scmp.eq.s32.totalorder %s15, 1
    %p68 = por %p66, %p67
    %p69 = scmp.ne.s32.totalorder %s58, %s59
    %p70 = scmp.eq.s32.totalorder %s15, 0
    %p71 = por %p69, %p70
    %p72 = scmp.ne.s32.totalorder %s58, %s59
    %p73 = scmp.eq.s32.totalorder %s16, 1
    %p74 = por %p72, %p73
    %p76 = scmp.ne.s32.totalorder %s59, %s75
    %p77 = scmp.eq.s32.totalorder %s16, 0
    %p78 = por %p76, %p77
    %s79 = ssub.s32 %s17, %s29
    %s80 = ssub.s32 %s18, %s25
    %s81 = sor.u32 %s79, %s80
    %p82 = scmp.eq.s32.totalorder %s81, 0
    %s84 = sadd.s32 %s83, 1
    %s85 = scalar_select %p82, %s83, %s84
    %p88 = pneg %p82
    %p89 = scmp.eq.s32.totalorder %s10, 1
    %p90 = por %p88, %p89
    %p91 = scmp.ne.s32.totalorder %s83, %s86
    %p92 = scmp.eq.s32.totalorder %s10, 0
    %p93 = por %p91, %p92
    %p94 = scmp.ne.s32.totalorder %s83, %s86
    %p95 = scmp.eq.s32.totalorder %s15, 1
    %p96 = por %p94, %p95
    %p97 = scmp.ne.s32.totalorder %s86, %s87
    %p98 = scmp.eq.s32.totalorder %s15, 0
    %p99 = por %p97, %p98
    %p100 = scmp.ne.s32.totalorder %s86, %s87
    %p101 = scmp.eq.s32.totalorder %s16, 1
    %p102 = por %p100, %p101
    %p104 = scmp.ne.s32.totalorder %s87, %s103
    %p105 = scmp.eq.s32.totalorder %s16, 0
    %p106 = por %p104, %p105
    %s107 = ssub.s32 %s17, %s29
    %s108 = ssub.s32 %s18, %s25
    %s109 = sor.u32 %s107, %s108
    %p110 = scmp.eq.s32.totalorder %s109, 0
    %s112 = sadd.s32 %s111, 1
    %s113 = scalar_select %p110, %s111, %s112
    %p116 = pneg %p110
    %p117 = scmp.eq.s32.totalorder %s10, 1
    %p118 = por %p116, %p117
    %p119 = scmp.ne.s32.totalorder %s111, %s114
    %p120 = scmp.eq.s32.totalorder %s10, 0
    %p121 = por %p119, %p120
    %p122 = scmp.ne.s32.totalorder %s111, %s114
    %p123 = scmp.eq.s32.totalorder %s15, 1
    %p124 = por %p122, %p123
    %p125 = scmp.ne.s32.totalorder %s114, %s115
    %p126 = scmp.eq.s32.totalorder %s15, 0
    %p127 = por %p125, %p126
    %p128 = scmp.ne.s32.totalorder %s114, %s115
    %p129 = scmp.eq.s32.totalorder %s16, 1
    %p130 = por %p128, %p129
    %p132 = scmp.ne.s32.totalorder %s115, %s131
    %p133 = scmp.eq.s32.totalorder %s16, 0
    %p134 = por %p132, %p133
    %p135 = scmp.le.s32.totalorder 1, %s10
    %p136 = scmp.lt.s32.totalorder %s10, 3
    %p137 = pnand %p135, %p136
    %p138 = pneg %p137
    // Predicated region
    $region9: #{conv_batch_norm_block.2} parent=5 // pred_check
      _
    $region10: #{conv_batch_norm_block.2} parent=5 // pred_check_branch
      %140 = sbr.rel (%p137) target = $region12
    $region11: #{conv_batch_norm_block.2} parent=5 // pred_region
      %s141 = ssub.s32 %s10, 1
      // Predicated region
      $region13: #{conv_batch_norm_block.2} parent=11 // pred_check
        %p142 = pneg %p43
      $region14: #{conv_batch_norm_block.2} parent=11 // pred_check_branch
        %144 = sbr.rel (%p142) target = $region16
      $region15: #{conv_batch_norm_block.2} parent=11 // pred_region
        _
      $region16: #{conv_batch_norm_block.2} parent=11 // pred_fallthru
        _
    $region12: #{conv_batch_norm_block.2} parent=5 // pred_fallthru
      _
    %p145 = scmp.lt.s32.totalorder %s10, 2
    // Predicated region
    $region17: #{conv_batch_norm_block.2} parent=5 // pred_check
      %p146 = pneg %p145
    $region18: #{conv_batch_norm_block.2} parent=5 // pred_check_branch
      %148 = sbr.rel (%p146) target = $region20
    $region19: #{conv_batch_norm_block.2} parent=5 // pred_region
      // Predicated region
      $region21: #{conv_batch_norm_block.2} parent=19 // pred_check
        %p149 = pneg %p65
      $region22: #{conv_batch_norm_block.2} parent=19 // pred_check_branch
        %151 = sbr.rel (%p149) target = $region24
      $region23: #{conv_batch_norm_block.2} parent=19 // pred_region
        %s152 = smul.u32 2, %s18
        %p153 = scmp.lt.s32.totalorder %s17, 1
        %s154 = scalar_select %p153, %s17, 1
        %p155 = scmp.lt.s32.totalorder %s152, 1
        %s156 = scalar_select %p155, %s152, 1
        %s157 = smul.addr %s154, 10
        %s158 = sadd.s32 %s156, %s157
        %s159 = smul.addr %s158, 8
        %s160 = scalar_lea.vmem %s1, %s159
        %s161 = smul.u32 2, %s18
      $region24: #{conv_batch_norm_block.2} parent=19 // pred_fallthru
        _
    $region20: #{conv_batch_norm_block.2} parent=5 // pred_fallthru
      _
    %p162 = scmp.le.s32.totalorder 1, %s10
    %p163 = scmp.lt.s32.totalorder %s10, 3
    %p164 = pnand %p162, %p163
    %p165 = pneg %p164
    // Predicated region
    $region25: #{conv_batch_norm_block.2} parent=5 // pred_check
      _
    $region26: #{conv_batch_norm_block.2} parent=5 // pred_check_branch
      %167 = sbr.rel (%p164) target = $region28
    $region27: #{conv_batch_norm_block.2} parent=5 // pred_region
      %s168 = ssub.s32 %s10, 1
      %p169 = pneg %p43
      %p170 = pneg %p40
      %s171 = smul.u32 2, %s20
      %p172 = scmp.lt.s32.totalorder %s19, 1
      %s173 = scalar_select %p172, %s19, 1
      %p174 = scmp.lt.s32.totalorder %s171, 1
      %s175 = scalar_select %p174, %s171, 1
      %s176 = smul.addr %s173, 10
      %s177 = sadd.s32 %s175, %s176
      %s178 = smul.addr %s177, 8
      %s179 = scalar_lea.vmem %s1, %s178
      %p180 = pneg %p71
      %p181 = pneg %p68
      %p182 = pneg %p99
      %p183 = pneg %p96
      %s184 = smul.u32 2, %s20
      %p185 = scmp.lt.s32.totalorder %s19, 1
      %s186 = scalar_select %p185, %s19, 1
      %p187 = scmp.lt.s32.totalorder %s184, 1
      %s188 = scalar_select %p187, %s184, 1
      %s189 = smul.addr %s186, 2
      %s190 = sadd.s32 %s188, %s189
      %s191 = smul.addr %s190, 8
      %s192 = scalar_lea.vmem %s2, %s191
      %p193 = pneg %p127
      %p194 = pneg %p124
      %p195 = scmp.lt.s32.totalorder %s19, 1
      %s196 = scalar_select %p195, %s19, 1
      %p197 = scmp.lt.s32.totalorder %s20, 0
      %s198 = scalar_select %p197, %s20, 0
      %s199 = sadd.s32 %s198, %s196
      %s200 = smul.addr %s199, 8
      %s201 = scalar_lea.vmem %s3, %s200
      %s202 = smul.u32 2, %s20
      %p203 = scmp.lt.s32.totalorder %s19, 1
      %s204 = scalar_select %p203, %s19, 1
      %p205 = scmp.lt.s32.totalorder %s202, 1
      %s206 = scalar_select %p205, %s202, 1
      %s207 = smul.addr %s204, 10
      %s208 = sadd.s32 %s206, %s207
      %s209 = smul.addr %s208, 8
      %s210 = scalar_lea.vmem %s1, %s209
      %s211 = smul.u32 2, %s20
      %s212 = smul.u32 2, %s20
      %p213 = scmp.lt.s32.totalorder %s19, 1
      %s214 = scalar_select %p213, %s19, 1
      %p215 = scmp.lt.s32.totalorder %s212, 1
      %s216 = scalar_select %p215, %s212, 1
      %s217 = smul.addr %s214, 2
      %s218 = sadd.s32 %s216, %s217
      %s219 = smul.addr %s218, 8
      %s220 = scalar_lea.vmem %s2, %s219
      %s221 = smul.u32 2, %s20
      %p222 = scmp.lt.s32.totalorder %s19, 1
      %s223 = scalar_select %p222, %s19, 1
      %p224 = scmp.lt.s32.totalorder %s20, 0
      %s225 = scalar_select %p224, %s20, 0
      %s226 = sadd.s32 %s225, %s223
      %s227 = smul.addr %s226, 8
      %s228 = scalar_lea.vmem %s3, %s227
      %v229 = vld [vmem:[%s0] sm:$0xff]
      %v230 = vld [vmem:[%s210] sm:$0xff]
      %v231 = vld [vmem:[%s210 + $0x8] sm:$0xff]
      %v232 = vld [vmem:[%s210 + $0x10] sm:$0xff]
      %v233 = vld [vmem:[%s210 + $0x18] sm:$0xff]
      %v234 = vld [vmem:[%s210 + $0x20] sm:$0xff]
      %v235 = vld [vmem:[%s210 + $0x28] sm:$0xff]
      %v236 = vld [vmem:[%s210 + $0x30] sm:$0xff]
      %v237 = vld [vmem:[%s210 + $0x38] sm:$0xff]
      %v238 = vld [vmem:[%s210 + $0x40] sm:$0xf]
      %v239 = vld [vmem:[%s210 + $0x48] sm:$0xf]
      %vm240 = vcmask 293888
      %v242 = vsel %vm240, %v229, 0
      %vm244 = vcmask 1043456
      %v246 = vsel %vm244, %v238, 0
      %v249 = vsel %vm244, %v239, 0
      %251 = vmatprep.subr.mxu0 0.0
      %252 = vmatpush1.msra.mxu0 0.0
      %253 = vmatprep.subr.mxu0 0.0
      %254 = vmatpush1.msra.mxu0 0.0
      %255 = vmatprep.subr.mxu0 0.0
      %256 = vmatpush1.msra.mxu0 0.0
      %257 = vmatprep.subr.mxu0 0.0
      %258 = vmatpush1.msra.mxu0 0.0
      %259 = vmatprep.subr.mxu0 0.0
      %260 = vmatpush1.msra.mxu0 0.0
      %261 = vmatprep.subr.mxu0 0.0
      %262 = vmatpush1.msra.mxu0 0.0
      %263 = vmatprep.subr.mxu0 0.0
      %264 = vmatpush1.msra.mxu0 0.0
      %265 = vmatprep.subr.mxu0 0.0
      %266 = vmatpush1.msra.mxu0 0.0
      %267 = vmatprep.subr.mxu0 0.0
      %268 = vmatpush1.msra.mxu0 0.0
      %269 = vmatprep.subr.mxu0 0.0
      %270 = vmatpush1.msra.mxu0 0.0
      %271 = vmatprep.subr.mxu0 0.0
      %272 = vmatpush1.msra.mxu0 0.0
      %273 = vmatprep.subr.mxu0 %v249
      %274 = vmatpush1.msra.mxu0 %v246
      %275 = vmatprep.subr.mxu0 %v237
      %276 = vmatpush1.msra.mxu0 %v236
      %277 = vmatprep.subr.mxu0 %v235
      %278 = vmatpush1.msra.mxu0 %v234
      %279 = vmatprep.subr.mxu0 %v233
      %280 = vmatpush1.msra.mxu0 %v232
      %281 = vmatprep.subr.mxu0 %v231
      %282 = vmatpush1.msra.mxu0 %v230
      %283 = vmatprep.subr.mxu0 0.0
      %284 = vmatpush2.msra.mxu0 0.0
      %285 = vmatprep.subr.mxu0 0.0
      %286 = vmatpush2.msra.mxu0 0.0
      %287 = vmatprep.subr.mxu0 0.0
      %288 = vmatpush2.msra.mxu0 0.0
      %289 = vmatprep.subr.mxu0 0.0
      %290 = vmatpush2.msra.mxu0 0.0
      %291 = vmatprep.subr.mxu0 0.0
      %292 = vmatpush2.msra.mxu0 0.0
      %293 = vmatprep.subr.mxu0 0.0
      %294 = vmatpush2.msra.mxu0 0.0
      %295 = vmatprep.subr.mxu0 0.0
      %296 = vmatpush2.msra.mxu0 0.0
      %297 = vmatprep.subr.mxu0 0.0
      %298 = vmatpush2.msra.mxu0 0.0
      %299 = vmatprep.subr.mxu0 0.0
      %300 = vmatpush2.msra.mxu0 0.0
      %301 = vmatprep.subr.mxu0 0.0
      %302 = vmatpush2.msra.mxu0 0.0
      %303 = vmatprep.subr.mxu0 0.0
      %304 = vmatpush2.msra.mxu0 0.0
      %305 = vmatprep.subr.mxu0 0.0
      %306 = vmatpush2.msra.mxu0 0.0
      %307 = vmatprep.subr.mxu0 0.0
      %308 = vmatpush2.msra.mxu0 0.0
      %309 = vmatprep.subr.mxu0 0.0
      %310 = vmatpush2.msra.mxu0 0.0
      %311 = vmatprep.subr.mxu0 0.0
      %312 = vmatpush2.msra.mxu0 0.0
      %313 = vmatprep.subr.mxu0 0.0
      %314 = vmatpush2.msra.mxu0 0.0
      %315 = vmatprep.mubr.f32.mxu0 0.0
      %316 = vmatmul.mubr.f32.gmra.mxu0 %v242
      %v317 = vpop.f32.mrf.mxu0
      %v318 = vadd.f32 0.0, %v317
      %v319 = vpop.f32.mrf.mxu0
      %v320 = vadd.f32 0.0, %v319
      %321 = vdwg.mxu0
      %322 = vst [vmem:[%s220] sm:$0xff] %v318
      %323 = vst [vmem:[%s220 + $0x8] sm:$0xff] %v320
      %s324 = smul.u32 %s20, 256
      %s325 = ssub.s32 256, %s324
      %p326 = scmp.lt.s32.totalorder %s325, 256
      %s327 = scalar_select %p326, %s325, 256
      %s328 = scvt.s32.f32 %s327
      %v329 = vadd.f32 %v318, %v320
      %330 = vadd.xlane.f32.xlu0 %v329
      %v331 = vpop.xlane.xlu0 %330
      %v332 = vstv %s328
      %v333 = vrcp.pop %v332
      %v334 = vmul.f32 %v331, %v333
      %v335 = vlaneseq
      %v336 = vand.u32 %v335, 127
      %v337 = vadd.s32 %v336, 128
      %v338 = vstv %s327
      %vm339 = vcmp.lt.s32.totalorder %v336, %v338
      %vm340 = vcmp.lt.s32.totalorder %v337, %v338
      %v341 = vsub.f32 %v318, %v334
      %v342 = vsub.f32 %v320, %v334
      %v343 = vsel %vm339, %v341, 0.0
      %v344 = vsel %vm340, %v342, 0.0
      %v345 = vmul.f32 %v343, %v343
      %v346 = vmul.f32 %v344, %v344
      %v347 = vadd.f32 %v345, %v346
      %348 = vadd.xlane.f32.xlu0 %v347
      %v349 = vpop.xlane.xlu0 %348
      %vm350 = vcmask 7168
      %v351 = vsel %vm350, %v331, %v349
      %vm352 = vcmask 15360
      %353 = vst.msk [vmem:[%s228] sm:$0xff] %vm352, %v351
      %s354 = smul.u32 2, %s20
      %p355 = scmp.lt.s32.totalorder %s19, 1
      %s356 = scalar_select %p355, %s19, 1
      %p357 = scmp.lt.s32.totalorder %s354, 1
      %s358 = scalar_select %p357, %s354, 1
      %s359 = smul.addr %s356, 2
      %s360 = sadd.s32 %s358, %s359
      %s361 = smul.addr %s360, 8
      %s362 = scalar_lea.vmem %s2, %s361
      %p363 = scmp.lt.s32.totalorder %s19, 1
      %s364 = scalar_select %p363, %s19, 1
      %p365 = scmp.lt.s32.totalorder %s20, 0
      %s366 = scalar_select %p365, %s20, 0
      %s367 = sadd.s32 %s366, %s364
      %s368 = smul.addr %s367, 8
      %s369 = scalar_lea.vmem %s3, %s368
      // Predicated region
      $region29: #{conv_batch_norm_block.2} parent=27 // pred_check
        %p370 = pneg %p96
      $region30: #{conv_batch_norm_block.2} parent=27 // pred_check_branch
        %372 = sbr.rel (%p370) target = $region32
      $region31: #{conv_batch_norm_block.2} parent=27 // pred_region
        %s373 = smul.u32 2, %s20
      $region32: #{conv_batch_norm_block.2} parent=27 // pred_fallthru
        _
      // Predicated region
      $region33: #{conv_batch_norm_block.2} parent=27 // pred_check
        %p374 = pneg %p124
      $region34: #{conv_batch_norm_block.2} parent=27 // pred_check_branch
        %376 = sbr.rel (%p374) target = $region36
      $region35: #{conv_batch_norm_block.2} parent=27 // pred_region
        _
      $region36: #{conv_batch_norm_block.2} parent=27 // pred_fallthru
        _
    $region28: #{conv_batch_norm_block.2} parent=5 // pred_fallthru
      _
    %p377 = scmp.le.s32.totalorder 2, %s10
    // Predicated region
    $region37: #{conv_batch_norm_block.2} parent=5 // pred_check
      %p378 = pneg %p377
    $region38: #{conv_batch_norm_block.2} parent=5 // pred_check_branch
      %380 = sbr.rel (%p378) target = $region40
    $region39: #{conv_batch_norm_block.2} parent=5 // pred_region
      %s381 = ssub.s32 %s10, 2
      // Predicated region
      $region41: #{conv_batch_norm_block.2} parent=39 // pred_check
        %p382 = pneg %p102
      $region42: #{conv_batch_norm_block.2} parent=39 // pred_check_branch
        %384 = sbr.rel (%p382) target = $region44
      $region43: #{conv_batch_norm_block.2} parent=39 // pred_region
        %s385 = smul.u32 2, %s22
        %p386 = scmp.lt.s32.totalorder %s21, 1
        %s387 = scalar_select %p386, %s21, 1
        %p388 = scmp.lt.s32.totalorder %s385, 1
        %s389 = scalar_select %p388, %s385, 1
        %s390 = smul.addr %s387, 2
        %s391 = sadd.s32 %s389, %s390
        %s392 = smul.addr %s391, 8
        %s393 = scalar_lea.vmem %s2, %s392
      $region44: #{conv_batch_norm_block.2} parent=39 // pred_fallthru
        _
      // Predicated region
      $region45: #{conv_batch_norm_block.2} parent=39 // pred_check
        %p394 = pneg %p130
      $region46: #{conv_batch_norm_block.2} parent=39 // pred_check_branch
        %396 = sbr.rel (%p394) target = $region48
      $region47: #{conv_batch_norm_block.2} parent=39 // pred_region
        %p397 = scmp.lt.s32.totalorder %s21, 1
        %s398 = scalar_select %p397, %s21, 1
        %p399 = scmp.lt.s32.totalorder %s22, 0
        %s400 = scalar_select %p399, %s22, 0
        %s401 = sadd.s32 %s400, %s398
        %s402 = smul.addr %s401, 8
        %s403 = scalar_lea.vmem %s3, %s402
      $region48: #{conv_batch_norm_block.2} parent=39 // pred_fallthru
        _
    $region40: #{conv_batch_norm_block.2} parent=5 // pred_fallthru
      _
  $region6: #{conv_batch_norm_block.2} parent=0 // loop_footer
    %s14 = sadd.s32 1, %s10
  $region7: #{conv_batch_norm_block.2} parent=0 // loop_footer_branch
    %9 = sbr.rel target = $region3
  $region8: #{conv_batch_norm_block.2} parent=0 // loop_exit
    _

</llo_original>
